<compile_context>
chip_gen: v6e
topology: v6e:2x2x1
jax: 0.10.0
libtpu: 0.0.40
codegen_flags: <defaults>
</compile_context>

<pallas_src>
import functools

import jax
import jax.numpy as jnp
from jax import lax
from jax.experimental import pallas as pl
from jax.experimental.pallas import tpu as pltpu


_TILE = 512          # A-tile edge: 512x512 int8 = 256 KiB per buffer
_EPS_SQ = 1e-24      # (PyG normalize eps=1e-12)^2, used with rsqrt


def _precompute_kernel(x_ref, w1l_ref, w1r_ref, b1_ref, xw_ref, xself_ref):
    """Prologue: xw = x @ w1l (bf16), xself = x @ w1r + b1 (f32). Per row block."""
    x = x_ref[...]                                            # bf16 (T, Fi)
    xw = jnp.dot(x, w1l_ref[...], preferred_element_type=jnp.float32)
    xw_ref[...] = xw.astype(jnp.bfloat16)
    xs = jnp.dot(x, w1r_ref[...], preferred_element_type=jnp.float32)
    xself_ref[...] = xs + b1_ref[...]


def _sage_agg1_kernel(a_ref, xw_ref, xself_ref, invdeg_ref,
                      w2l_ref, w2r_ref, b2_ref,
                      hw_ref, hself_ref, acc_ref):
    """Layer 1 aggregation (reassociated) + layer-2 weight pre-application."""
    k = pl.program_id(1)

    @pl.when(k == 0)
    def _():
        acc_ref[...] = jnp.zeros_like(acc_ref)

    # int8 adjacency tile -> bf16 for the MXU (s8->f32->bf16: portable Mosaic converts).
    a = a_ref[...].astype(jnp.float32).astype(jnp.bfloat16)
    acc_ref[...] += jnp.dot(a, xw_ref[...], preferred_element_type=jnp.float32)

    @pl.when(k == pl.num_programs(1) - 1)
    def _():
        # deferred mean (f32 1/deg row scale) + self term; then normalize + relu
        h = acc_ref[...] * invdeg_ref[...] + xself_ref[...]
        sumsq = jnp.sum(h * h, axis=-1, keepdims=True)
        h = h * lax.rsqrt(jnp.maximum(sumsq, _EPS_SQ))        # F.normalize(p=2, dim=-1)
        h = jnp.maximum(h, 0.0)                               # relu
        # dropout(p=0.6): identity in eval mode
        hb = h.astype(jnp.bfloat16)
        # layer-2 reassociation: emit h @ w2l (aggregated next) and h @ w2r + b2 (self)
        hw_ref[...] = jnp.dot(hb, w2l_ref[...],
                              preferred_element_type=jnp.float32).astype(jnp.bfloat16)
        hs = jnp.dot(hb, w2r_ref[...], preferred_element_type=jnp.float32) + b2_ref[...]
        hself_ref[...] = hs.astype(jnp.bfloat16)


def _sage_agg2_kernel(a_ref, hw_ref, hself_ref, invdeg_ref,
                      out_ref, acc_ref, *, out_feats):
    """Layer 2: o = 1/deg * (A @ (h @ w2l)) + (h @ w2r + b2); normalize; log_softmax."""
    k = pl.program_id(1)

    @pl.when(k == 0)
    def _():
        acc_ref[...] = jnp.zeros_like(acc_ref)

    a = a_ref[...].astype(jnp.float32).astype(jnp.bfloat16)
    acc_ref[...] += jnp.dot(a, hw_ref[...], preferred_element_type=jnp.float32)

    @pl.when(k == pl.num_programs(1) - 1)
    def _():
        o = acc_ref[...] * invdeg_ref[...] + hself_ref[...].astype(jnp.float32)
        sumsq = jnp.sum(o * o, axis=-1, keepdims=True)        # padded lanes are exact 0
        o = o * lax.rsqrt(jnp.maximum(sumsq, _EPS_SQ))
        # mask padded lanes before log_softmax over dim=1
        lane = lax.broadcasted_iota(jnp.int32, o.shape, 1)
        o = jnp.where(lane < out_feats, o, -1e30)
        m = jnp.max(o, axis=-1, keepdims=True)
        z = o - m
        lse = jnp.log(jnp.sum(jnp.exp(z), axis=-1, keepdims=True))
        out_ref[...] = z - lse


def _round_up(v, m):
    return ((v + m - 1) // m) * m


def graphsage_forward(x, edge_index, params):
    """x: (N, in_feats) f32; edge_index: (2, E) int32 with [src; dst] rows."""
    N, in_feats = x.shape
    h_feats = params["w1l"].shape[1]
    out_feats = params["w2l"].shape[1]

    T = _TILE
    Np = _round_up(N, T)
    Fi = _round_up(in_feats, 128)
    Fh = _round_up(h_feats, 128)
    Fo = _round_up(out_feats, 128)

    src = edge_index[0].astype(jnp.int32)
    dst = edge_index[1].astype(jnp.int32)
    E = src.shape[0]

    # --- glue: int8 0/1-count adjacency (exact for <=127 parallel edges), built without
    #     any f32 N^2 intermediate; O(E) segment_sum degree; f32 1/deg row scale. ---
    A = jnp.zeros((Np, Np), jnp.int8).at[dst, src].add(jnp.ones((E,), jnp.int8))
    deg = jax.ops.segment_sum(jnp.ones((E,), jnp.float32), dst, num_segments=Np)
    inv_deg = jnp.where(deg > 0, 1.0 / jnp.maximum(deg, 1.0),
                        0.0).reshape(Np, 1).astype(jnp.float32)

    # --- lane-pad features / weights to 128; all matmul operands bf16 ---
    xp = jnp.zeros((Np, Fi), jnp.bfloat16).at[:N, :in_feats].set(x.astype(jnp.bfloat16))

    def pad2(w, r, c, dt):
        return jnp.zeros((r, c), dt).at[:w.shape[0], :w.shape[1]].set(w.astype(dt))

    w1l = pad2(params["w1l"], Fi, Fh, jnp.bfloat16)
    w1r = pad2(params["w1r"], Fi, Fh, jnp.bfloat16)
    b1 = pad2(params["b1"], 1, Fh, jnp.float32)
    w2l = pad2(params["w2l"], Fh, Fo, jnp.bfloat16)
    w2r = pad2(params["w2r"], Fh, Fo, jnp.bfloat16)
    b2 = pad2(params["b2"], 1, Fo, jnp.float32)

    cparams = pltpu.CompilerParams(
        dimension_semantics=("parallel", "arbitrary"),
        vmem_limit_bytes=48 * 1024 * 1024)
    cparams_rows = pltpu.CompilerParams(
        dimension_semantics=("parallel",),
        vmem_limit_bytes=48 * 1024 * 1024)

    # triple-buffer the A-tile stream (the DMA-bound operand)
    a_spec = pl.BlockSpec((T, T), lambda i, k: (i, k), pipeline_mode=pl.Buffered(3))
    row_spec = lambda w: pl.BlockSpec((T, w), lambda i, k: (i, 0))
    k_spec = lambda w: pl.BlockSpec((T, w), lambda i, k: (k, 0))
    full_spec = lambda r, c: pl.BlockSpec((r, c), lambda i, k: (0, 0))

    grid = (Np // T, Np // T)

    # ---- prologue: xw = x @ w1l (bf16), xself = x @ w1r + b1 (f32) ----
    xw, xself = pl.pallas_call(
        _precompute_kernel,
        out_shape=(jax.ShapeDtypeStruct((Np, Fh), jnp.bfloat16),
                   jax.ShapeDtypeStruct((Np, Fh), jnp.float32)),
        grid_spec=pltpu.PrefetchScalarGridSpec(
            num_scalar_prefetch=0, grid=(Np // T,),
            in_specs=[pl.BlockSpec((T, Fi), lambda i: (i, 0)),
                      pl.BlockSpec((Fi, Fh), lambda i: (0, 0)),
                      pl.BlockSpec((Fi, Fh), lambda i: (0, 0)),
                      pl.BlockSpec((1, Fh), lambda i: (0, 0))],
            out_specs=(pl.BlockSpec((T, Fh), lambda i: (i, 0)),
                       pl.BlockSpec((T, Fh), lambda i: (i, 0)))),
        compiler_params=cparams_rows,
    )(xp, w1l, w1r, b1)

    # ---- layer 1 aggregation (emits hw = h @ w2l and hself = h @ w2r + b2, both bf16) ----
    hw, hself = pl.pallas_call(
        _sage_agg1_kernel,
        out_shape=(jax.ShapeDtypeStruct((Np, Fo), jnp.bfloat16),
                   jax.ShapeDtypeStruct((Np, Fo), jnp.bfloat16)),
        grid_spec=pltpu.PrefetchScalarGridSpec(
            num_scalar_prefetch=0, grid=grid,
            in_specs=[a_spec,            # A tile (int8)
                      k_spec(Fh),        # xw (bf16, aggregated side)
                      row_spec(Fh),      # xself (f32, self side)
                      row_spec(1),       # 1/deg (f32)
                      full_spec(Fh, Fo), full_spec(Fh, Fo), full_spec(1, Fo)],
            out_specs=(row_spec(Fo), row_spec(Fo)),
            scratch_shapes=[pltpu.VMEM((T, Fh), jnp.float32)]),
        compiler_params=cparams,
    )(A, xw, xself, inv_deg, w2l, w2r, b2)

    # ---- layer 2 aggregation + normalize + log_softmax ----
    out_pad = pl.pallas_call(
        functools.partial(_sage_agg2_kernel, out_feats=out_feats),
        out_shape=jax.ShapeDtypeStruct((Np, Fo), jnp.float32),
        grid_spec=pltpu.PrefetchScalarGridSpec(
            num_scalar_prefetch=0, grid=grid,
            in_specs=[a_spec,            # A tile (int8)
                      k_spec(Fo),        # h @ w2l (bf16, aggregated side)
                      row_spec(Fo),      # h @ w2r + b2 (bf16, self side)
                      row_spec(1)],      # 1/deg (f32)
            out_specs=row_spec(Fo),
            scratch_shapes=[pltpu.VMEM((T, Fo), jnp.float32)]),
        compiler_params=cparams,
    )(A, hw, hself, inv_deg)

    return out_pad[:N, :out_feats]


def _reference_forward(x, edge_index, params):
    """Pure-JAX f32 reference mirroring PyG SAGEConv(mean, normalize) semantics."""
    N = x.shape[0]
    src, dst = edge_index[0], edge_index[1]
    adj = jnp.zeros((N, N), jnp.float32).at[dst, src].add(1.0)
    deg = jnp.sum(adj, axis=1, keepdims=True)
    A = jnp.where(deg > 0, adj / jnp.maximum(deg, 1.0), 0.0)

    def sage(xin, wl, wr, b):
        out = (A @ xin) @ wl + b + xin @ wr
        n = jnp.sqrt(jnp.sum(out * out, axis=-1, keepdims=True))
        return out / jnp.maximum(n, 1e-12)

    h = jnp.maximum(sage(x, params["w1l"], params["w1r"], params["b1"]), 0.0)
    o = sage(h, params["w2l"], params["w2r"], params["b2"])
    return jax.nn.log_softmax(o, axis=-1)


def init_params(key, in_feats, h_feats, out_feats):
    ks = jax.random.split(key, 6)
    s = 0.1
    return {
        # lin_l (aggregated-neighbor weight, with bias) and lin_r (root weight, no bias)
        "w1l": (s * jax.random.normal(ks[0], (in_feats, h_feats))).astype(jnp.float32),
        "w1r": (s * jax.random.normal(ks[1], (in_feats, h_feats))).astype(jnp.float32),
        "b1":  (s * jax.random.normal(ks[2], (1, h_feats))).astype(jnp.float32),
        "w2l": (s * jax.random.normal(ks[3], (h_feats, out_feats))).astype(jnp.float32),
        "w2r": (s * jax.random.normal(ks[4], (h_feats, out_feats))).astype(jnp.float32),
        "b2":  (s * jax.random.normal(ks[5], (1, out_feats))).astype(jnp.float32),
    }


if __name__ == "__main__":
    key = jax.random.PRNGKey(0)
    k_x, k_e, k_p = jax.random.split(key, 3)

    N, E = 32, 64
    in_feats, h_feats, out_feats = 16, 32, 8

    x = jax.random.normal(k_x, (N, in_feats), dtype=jnp.float32)
    edge_index = jax.random.randint(k_e, (2, E), 0, N, dtype=jnp.int32)
    params = init_params(k_p, in_feats, h_feats, out_feats)

    logp = graphsage_forward(x, edge_index, params)
    jax.block_until_ready(logp)

    assert logp.shape == (N, out_feats)
    # rows of log_softmax must exponentiate to ~1
    row_sums = jnp.sum(jnp.exp(logp), axis=1)
    assert bool(jnp.all(jnp.abs(row_sums - 1.0) < 1e-3))

    # compare against f32 pure-JAX reference (int8 A / bf16 operands introduce small diffs)
    ref = _reference_forward(x, edge_index, params)
    max_err = float(jnp.max(jnp.abs(logp - ref)))
    assert max_err < 1e-1, f"max |diff| vs reference = {max_err}"

    print("KERNEL_OK")
</pallas_src>

<mosaic_0001>
module attributes {stable_mosaic.version = 11 : i64} {
  func.func @_precompute_kernel(%arg0: i32, %arg1: memref<512x128xbf16, #tpu.memory_space<vmem>>, %arg2: memref<128x128xbf16, #tpu.memory_space<vmem>>, %arg3: memref<128x128xbf16, #tpu.memory_space<vmem>>, %arg4: memref<1x128xf32, #tpu.memory_space<vmem>>, %arg5: memref<512x128xbf16, #tpu.memory_space<vmem>>, %arg6: memref<512x128xf32, #tpu.memory_space<vmem>>) attributes {dimension_semantics = [#tpu.dimension_semantics<parallel>], iteration_bounds = array<i64: 1>, scalar_prefetch = 0 : i64, scratch_operands = 0 : i64, tpu.core_type = #tpu.core_type<tc>, window_params = [{transform_indices = @transform_0, window_bounds = array<i64: 512, 128>}, {pipeline_mode = #tpu.pipeline_mode<synchronous>, transform_indices = @transform_1, window_bounds = array<i64: 128, 128>}, {pipeline_mode = #tpu.pipeline_mode<synchronous>, transform_indices = @transform_2, window_bounds = array<i64: 128, 128>}, {pipeline_mode = #tpu.pipeline_mode<synchronous>, transform_indices = @transform_3, window_bounds = array<i64: 1, 128>}, {transform_indices = @transform_4, window_bounds = array<i64: 512, 128>}, {transform_indices = @transform_5, window_bounds = array<i64: 512, 128>}]} {
    %c0 = arith.constant 0 : index
    %c0_0 = arith.constant 0 : index
    %0 = vector.load %arg1[%c0, %c0_0] : memref<512x128xbf16, #tpu.memory_space<vmem>>, vector<512x128xbf16>
    %c0_1 = arith.constant 0 : index
    %c0_2 = arith.constant 0 : index
    %1 = vector.load %arg2[%c0_1, %c0_2] : memref<128x128xbf16, #tpu.memory_space<vmem>>, vector<128x128xbf16>
    %cst = arith.constant dense<0.000000e+00> : vector<512x128xf32>
    %2 = tpu.matmul %0, %1, %cst {dimension_numbers = #tpu.dot_dimension_numbers<[1], [0], [0], [1], [0, 0, 1, 1], [], []>} : vector<512x128xbf16>, vector<128x128xbf16>, vector<512x128xf32> -> vector<512x128xf32>
    %3 = arith.truncf %2 : vector<512x128xf32> to vector<512x128xbf16>
    %c0_3 = arith.constant 0 : index
    %c0_4 = arith.constant 0 : index
    %4 = vector.load %arg5[%c0_3, %c0_4] : memref<512x128xbf16, #tpu.memory_space<vmem>>, vector<512x128xbf16>
    tpu.vector_store %arg5[%c0_3, %c0_4], %3 {strides = array<i32>} : memref<512x128xbf16, #tpu.memory_space<vmem>>, vector<512x128xbf16>,
    %c0_5 = arith.constant 0 : index
    %c0_6 = arith.constant 0 : index
    %5 = vector.load %arg3[%c0_5, %c0_6] : memref<128x128xbf16, #tpu.memory_space<vmem>>, vector<128x128xbf16>
    %cst_7 = arith.constant dense<0.000000e+00> : vector<512x128xf32>
    %6 = tpu.matmul %0, %5, %cst_7 {dimension_numbers = #tpu.dot_dimension_numbers<[1], [0], [0], [1], [0, 0, 1, 1], [], []>} : vector<512x128xbf16>, vector<128x128xbf16>, vector<512x128xf32> -> vector<512x128xf32>
    %c0_8 = arith.constant 0 : index
    %c0_9 = arith.constant 0 : index
    %7 = vector.load %arg4[%c0_8, %c0_9] : memref<1x128xf32, #tpu.memory_space<vmem>>, vector<1x128xf32>
    %8 = vector.broadcast %7 : vector<1x128xf32> to vector<512x128xf32>
    %9 = arith.addf %6, %8 : vector<512x128xf32>
    %c0_10 = arith.constant 0 : index
    %c0_11 = arith.constant 0 : index
    %10 = vector.load %arg6[%c0_10, %c0_11] : memref<512x128xf32, #tpu.memory_space<vmem>>, vector<512x128xf32>
    tpu.vector_store %arg6[%c0_10, %c0_11], %9 {strides = array<i32>} : memref<512x128xf32, #tpu.memory_space<vmem>>, vector<512x128xf32>,
    return
  }
  func.func @transform_0(%arg0: i32) -> (i32, i32) {
    %c0_i32 = arith.constant 0 : i32
    %c0_i32_0 = arith.constant 0 : i32
    return %arg0, %c0_i32 : i32, i32
  }
  func.func @transform_1(%arg0: i32) -> (i32, i32) {
    %c0_i32 = arith.constant 0 : i32
    %c0_i32_0 = arith.constant 0 : i32
    %c0_i32_1 = arith.constant 0 : i32
    return %c0_i32, %c0_i32_0 : i32, i32
  }
  func.func @transform_2(%arg0: i32) -> (i32, i32) {
    %c0_i32 = arith.constant 0 : i32
    %c0_i32_0 = arith.constant 0 : i32
    %c0_i32_1 = arith.constant 0 : i32
    return %c0_i32, %c0_i32_0 : i32, i32
  }
  func.func @transform_3(%arg0: i32) -> (i32, i32) {
    %c0_i32 = arith.constant 0 : i32
    %c0_i32_0 = arith.constant 0 : i32
    %c0_i32_1 = arith.constant 0 : i32
    return %c0_i32, %c0_i32_0 : i32, i32
  }
  func.func @transform_4(%arg0: i32) -> (i32, i32) {
    %c0_i32 = arith.constant 0 : i32
    %c0_i32_0 = arith.constant 0 : i32
    return %arg0, %c0_i32 : i32, i32
  }
  func.func @transform_5(%arg0: i32) -> (i32, i32) {
    %c0_i32 = arith.constant 0 : i32
    %c0_i32_0 = arith.constant 0 : i32
    return %arg0, %c0_i32 : i32, i32
  }
}

</mosaic_0001>

<llo_original>
// kernel: tpu_custom_call.1
$region0: #{tpu_custom_call.1}
  #allocation0 [shape = 'u32[]', space=smem, size = 0x4, offset = 0x4, fixed_abs, tag = 'smem constant byte address 0x4 - core index']
  #allocation1 [shape = 'u32[144,128]{1,0:T(1,128)}', space=vmem, size = 0x12000, scoped, tag = 'internal scratch']
  %s0 = inlined_call_operand.hbm [shape: bf16[512,128], index: 0, kind: input, shape index: {}]
  %s1 = inlined_call_operand.hbm [shape: bf16[128,128], index: 1, kind: input, shape index: {}]
  %s2 = inlined_call_operand.hbm [shape: bf16[128,128], index: 2, kind: input, shape index: {}]
  %s3 = inlined_call_operand.vmem [shape: f32[1,128], index: 3, kind: input, shape index: {}]
  %s4 = inlined_call_operand.hbm [shape: bf16[512,128], index: 4, kind: output, shape index: {0}]
  %s5 = inlined_call_operand.hbm [shape: f32[512,128], index: 5, kind: output, shape index: {1}]
  %6 = xla_tuple %s4, %s5
  %s7 = sld [smem:[#allocation0]]
  $region46: #{tpu_custom_call.1} parent=0
    _
  %s9 = ssub.s32 1, %s7
  %s10 = scalar_select 0, %s9, %s7
  $region1: #{tpu_custom_call.1} parent=0
    #allocation2 [shape = 'u8[131072]{0}', space=vmem, size = 0x20000, scoped, tag = 'input window, operand 0, single buffered']
    #allocation3 [shape = 's32[1]{0}', space=sflag, size = 0x4, scoped, tag = 'scoped memory for tpu_custom_call.1']
    #allocation4 [shape = 's32[1]{0}', space=sflag, size = 0x4, scoped, tag = 'scoped memory for tpu_custom_call.1']
    #allocation5 [shape = 'u8[32768]{0}', space=vmem, size = 0x8000, scoped, tag = 'input window, operand 1, single buffered']
    #allocation6 [shape = 's32[1]{0}', space=sflag, size = 0x4, scoped, tag = 'scoped memory for tpu_custom_call.1']
    #allocation7 [shape = 'u8[32768]{0}', space=vmem, size = 0x8000, scoped, tag = 'input window, operand 2, single buffered']
    #allocation8 [shape = 'u8[131072]{0}', space=vmem, size = 0x20000, scoped, tag = 'output window, operand 0, single buffered']
    #allocation9 [shape = 'u8[262144]{0}', space=vmem, size = 0x40000, scoped, tag = 'output window, operand 1, single buffered']
    #allocation10 [shape = 's32[1]{0}', space=sflag, size = 0x4, scoped, tag = 'scoped memory for tpu_custom_call.1']
    %11 = vsyncpa [#allocation3], 0
    %12 = vsyncpa [#allocation6], 0
    %13 = vsyncpa [#allocation4], 0
    %14 = vsyncpa [#allocation10], 0
    // Predicated region
    $region2: #{tpu_custom_call.1} parent=1 // pred_check
      _
    $region3: #{tpu_custom_call.1} parent=1 // pred_check_branch
      %16 = sbr.rel (0) target = $region5
    $region4: #{tpu_custom_call.1} parent=1 // pred_region
      %s18 = ssub.s32 4096, 4096
      %19 = vsyncadd [#allocation3], %s18
      %s20 = sshll.u32 [#allocation2], 4
      %s21 = int_to_ptr.vmem [resolvable:$true] %s20
      %26 = dma.hbm_to_vmem [thread:$0]  %s0, 4096, %s21, [#allocation3], 64, 64, 4
    $region5: #{tpu_custom_call.1} parent=1 // pred_fallthru
      _
    // Predicated region
    $region6: #{tpu_custom_call.1} parent=1 // pred_check
      _
    $region7: #{tpu_custom_call.1} parent=1 // pred_check_branch
      %28 = sbr.rel (0) target = $region9
    $region8: #{tpu_custom_call.1} parent=1 // pred_region
      %s30 = ssub.s32 1024, 1024
      %31 = vsyncadd [#allocation6], %s30
      %s32 = sshll.u32 [#allocation5], 4
      %s33 = int_to_ptr.vmem [resolvable:$true] %s32
      %38 = dma.hbm_to_vmem [thread:$0]  %s1, 1024, %s33, [#allocation6], 64, 64, 4
    $region9: #{tpu_custom_call.1} parent=1 // pred_fallthru
      _
    // Predicated region
    $region10: #{tpu_custom_call.1} parent=1 // pred_check
      _
    $region11: #{tpu_custom_call.1} parent=1 // pred_check_branch
      %40 = sbr.rel (0) target = $region13
    $region12: #{tpu_custom_call.1} parent=1 // pred_region
      %s42 = ssub.s32 1024, 1024
      %43 = vsyncadd [#allocation6], %s42
      %s44 = sshll.u32 [#allocation7], 4
      %s45 = int_to_ptr.vmem [resolvable:$true] %s44
      %50 = dma.hbm_to_vmem [thread:$0]  %s2, 1024, %s45, [#allocation6], 64, 64, 4
    $region13: #{tpu_custom_call.1} parent=1 // pred_fallthru
      _
    // Predicated region
    $region14: #{tpu_custom_call.1} parent=1 // pred_check
      _
    $region15: #{tpu_custom_call.1} parent=1 // pred_check_branch
      %52 = sbr.rel (0) target = $region17
    $region16: #{tpu_custom_call.1} parent=1 // pred_region
      _
    $region17: #{tpu_custom_call.1} parent=1 // pred_fallthru
      _
    // Predicated region
    $region18: #{tpu_custom_call.1} parent=1 // pred_check
      _
    $region19: #{tpu_custom_call.1} parent=1 // pred_check_branch
      %54 = sbr.rel (0) target = $region21
    $region20: #{tpu_custom_call.1} parent=1 // pred_region
      %55 = dma.done [#allocation3], 4096
    $region21: #{tpu_custom_call.1} parent=1 // pred_fallthru
      _
    // Predicated region
    $region22: #{tpu_custom_call.1} parent=1 // pred_check
      _
    $region23: #{tpu_custom_call.1} parent=1 // pred_check_branch
      %57 = sbr.rel (0) target = $region25
    $region24: #{tpu_custom_call.1} parent=1 // pred_region
      %58 = dma.done [#allocation6], 1024
    $region25: #{tpu_custom_call.1} parent=1 // pred_fallthru
      _
    // Predicated region
    $region26: #{tpu_custom_call.1} parent=1 // pred_check
      _
    $region27: #{tpu_custom_call.1} parent=1 // pred_check_branch
      %60 = sbr.rel (0) target = $region29
    $region28: #{tpu_custom_call.1} parent=1 // pred_region
      %61 = dma.done [#allocation6], 1024
    $region29: #{tpu_custom_call.1} parent=1 // pred_fallthru
      _
    %v63 = vld [vmem:[#allocation2] sm:$0xf]
    %v64 = vld [vmem:[#allocation2 + $0x4] sm:$0xf]
    %v65 = vld [vmem:[#allocation2 + $0x8] sm:$0xf]
    %v66 = vld [vmem:[#allocation2 + $0xc] sm:$0xf]
    %v67 = vld [vmem:[#allocation2 + $0x10] sm:$0xf]
    %v68 = vld [vmem:[#allocation2 + $0x14] sm:$0xf]
    %v69 = vld [vmem:[#allocation2 + $0x18] sm:$0xf]
    %v70 = vld [vmem:[#allocation2 + $0x1c] sm:$0xf]
    %v71 = vld [vmem:[#allocation2 + $0x20] sm:$0xf]
    %v72 = vld [vmem:[#allocation2 + $0x24] sm:$0xf]
    %v73 = vld [vmem:[#allocation2 + $0x28] sm:$0xf]
    %v74 = vld [vmem:[#allocation2 + $0x2c] sm:$0xf]
    %v75 = vld [vmem:[#allocation2 + $0x30] sm:$0xf]
    %v76 = vld [vmem:[#allocation2 + $0x34] sm:$0xf]
    %v77 = vld [vmem:[#allocation2 + $0x38] sm:$0xf]
    %v78 = vld [vmem:[#allocation2 + $0x3c] sm:$0xf]
    %v79 = vld [vmem:[#allocation2 + $0x40] sm:$0xf]
    %v80 = vld [vmem:[#allocation2 + $0x44] sm:$0xf]
    %v81 = vld [vmem:[#allocation2 + $0x48] sm:$0xf]
    %v82 = vld [vmem:[#allocation2 + $0x4c] sm:$0xf]
    %v83 = vld [vmem:[#allocation2 + $0x50] sm:$0xf]
    %v84 = vld [vmem:[#allocation2 + $0x54] sm:$0xf]
    %v85 = vld [vmem:[#allocation2 + $0x58] sm:$0xf]
    %v86 = vld [vmem:[#allocation2 + $0x5c] sm:$0xf]
    %v87 = vld [vmem:[#allocation2 + $0x60] sm:$0xf]
    %v88 = vld [vmem:[#allocation2 + $0x64] sm:$0xf]
    %v89 = vld [vmem:[#allocation2 + $0x68] sm:$0xf]
    %v90 = vld [vmem:[#allocation2 + $0x6c] sm:$0xf]
    %v91 = vld [vmem:[#allocation2 + $0x70] sm:$0xf]
    %v92 = vld [vmem:[#allocation2 + $0x74] sm:$0xf]
    %v93 = vld [vmem:[#allocation2 + $0x78] sm:$0xf]
    %v94 = vld [vmem:[#allocation2 + $0x7c] sm:$0xf]
    %v95 = vld [vmem:[#allocation2 + $0x80] sm:$0xf]
    %v96 = vld [vmem:[#allocation2 + $0x84] sm:$0xf]
    %v97 = vld [vmem:[#allocation2 + $0x88] sm:$0xf]
    %v98 = vld [vmem:[#allocation2 + $0x8c] sm:$0xf]
    %v99 = vld [vmem:[#allocation2 + $0x90] sm:$0xf]
    %v100 = vld [vmem:[#allocation2 + $0x94] sm:$0xf]
    %v101 = vld [vmem:[#allocation2 + $0x98] sm:$0xf]
    %v102 = vld [vmem:[#allocation2 + $0x9c] sm:$0xf]
    %v103 = vld [vmem:[#allocation2 + $0xa0] sm:$0xf]
    %v104 = vld [vmem:[#allocation2 + $0xa4] sm:$0xf]
    %v105 = vld [vmem:[#allocation2 + $0xa8] sm:$0xf]
    %v106 = vld [vmem:[#allocation2 + $0xac] sm:$0xf]
    %v107 = vld [vmem:[#allocation2 + $0xb0] sm:$0xf]
    %v108 = vld [vmem:[#allocation2 + $0xb4] sm:$0xf]
    %v109 = vld [vmem:[#allocation2 + $0xb8] sm:$0xf]
    %v110 = vld [vmem:[#allocation2 + $0xbc] sm:$0xf]
    %v111 = vld [vmem:[#allocation2 + $0xc0] sm:$0xf]
    %v112 = vld [vmem:[#allocation2 + $0xc4] sm:$0xf]
    %v113 = vld [vmem:[#allocation2 + $0xc8] sm:$0xf]
    %v114 = vld [vmem:[#allocation2 + $0xcc] sm:$0xf]
    %v115 = vld [vmem:[#allocation2 + $0xd0] sm:$0xf]
    %v116 = vld [vmem:[#allocation2 + $0xd4] sm:$0xf]
    %v117 = vld [vmem:[#allocation2 + $0xd8] sm:$0xf]
    %v118 = vld [vmem:[#allocation2 + $0xdc] sm:$0xf]
    %v119 = vld [vmem:[#allocation2 + $0xe0] sm:$0xf]
    %v120 = vld [vmem:[#allocation2 + $0xe4] sm:$0xf]
    %v121 = vld [vmem:[#allocation2 + $0xe8] sm:$0xf]
    %v122 = vld [vmem:[#allocation2 + $0xec] sm:$0xf]
    %v123 = vld [vmem:[#allocation2 + $0xf0] sm:$0xf]
    %v124 = vld [vmem:[#allocation2 + $0xf4] sm:$0xf]
    %v125 = vld [vmem:[#allocation2 + $0xf8] sm:$0xf]
    %v126 = vld [vmem:[#allocation2 + $0xfc] sm:$0xf]
    %v127 = vld [vmem:[#allocation5] sm:$0xf]
    %v128 = vld [vmem:[#allocation5 + $0x4] sm:$0xf]
    %v129 = vld [vmem:[#allocation5 + $0x8] sm:$0xf]
    %v130 = vld [vmem:[#allocation5 + $0xc] sm:$0xf]
    %v131 = vld [vmem:[#allocation5 + $0x10] sm:$0xf]
    %v132 = vld [vmem:[#allocation5 + $0x14] sm:$0xf]
    %v133 = vld [vmem:[#allocation5 + $0x18] sm:$0xf]
    %v134 = vld [vmem:[#allocation5 + $0x1c] sm:$0xf]
    %v135 = vld [vmem:[#allocation5 + $0x20] sm:$0xf]
    %v136 = vld [vmem:[#allocation5 + $0x24] sm:$0xf]
    %v137 = vld [vmem:[#allocation5 + $0x28] sm:$0xf]
    %v138 = vld [vmem:[#allocation5 + $0x2c] sm:$0xf]
    %v139 = vld [vmem:[#allocation5 + $0x30] sm:$0xf]
    %v140 = vld [vmem:[#allocation5 + $0x34] sm:$0xf]
    %v141 = vld [vmem:[#allocation5 + $0x38] sm:$0xf]
    %v142 = vld [vmem:[#allocation5 + $0x3c] sm:$0xf]
    %v207 = vunpack.c.l.b16 %v63
    %v208 = vunpack.c.l.b16 %v64
    %v209 = vunpack.c.l.b16 %v65
    %v210 = vunpack.c.l.b16 %v66
    %v211 = vunpack.c.l.b16 %v67
    %v212 = vunpack.c.l.b16 %v68
    %v213 = vunpack.c.l.b16 %v69
    %v214 = vunpack.c.l.b16 %v70
    %v215 = vunpack.c.l.b16 %v71
    %v216 = vunpack.c.l.b16 %v72
    %v217 = vunpack.c.l.b16 %v73
    %v218 = vunpack.c.l.b16 %v74
    %v219 = vunpack.c.l.b16 %v75
    %v220 = vunpack.c.l.b16 %v76
    %v221 = vunpack.c.l.b16 %v77
    %v222 = vunpack.c.l.b16 %v78
    %v223 = vunpack.c.l.b16 %v79
    %v224 = vunpack.c.l.b16 %v80
    %v225 = vunpack.c.l.b16 %v81
    %v226 = vunpack.c.l.b16 %v82
    %v227 = vunpack.c.l.b16 %v83
    %v228 = vunpack.c.l.b16 %v84
    %v229 = vunpack.c.l.b16 %v85
    %v230 = vunpack.c.l.b16 %v86
    %v231 = vunpack.c.l.b16 %v87
    %v232 = vunpack.c.l.b16 %v88
    %v233 = vunpack.c.l.b16 %v89
    %v234 = vunpack.c.l.b16 %v90
    %v235 = vunpack.c.l.b16 %v91
    %v236 = vunpack.c.l.b16 %v92
    %v237 = vunpack.c.l.b16 %v93
    %v238 = vunpack.c.l.b16 %v94
    %v239 = vunpack.c.l.b16 %v95
    %v240 = vunpack.c.l.b16 %v96
    %v241 = vunpack.c.l.b16 %v97
    %v242 = vunpack.c.l.b16 %v98
    %v243 = vunpack.c.l.b16 %v99
    %v244 = vunpack.c.l.b16 %v100
    %v245 = vunpack.c.l.b16 %v101
    %v246 = vunpack.c.l.b16 %v102
    %v247 = vunpack.c.l.b16 %v103
    %v248 = vunpack.c.l.b16 %v104
    %v249 = vunpack.c.l.b16 %v105
    %v250 = vunpack.c.l.b16 %v106
    %v251 = vunpack.c.l.b16 %v107
    %v252 = vunpack.c.l.b16 %v108
    %v253 = vunpack.c.l.b16 %v109
    %v254 = vunpack.c.l.b16 %v110
    %v255 = vunpack.c.l.b16 %v111
    %v256 = vunpack.c.l.b16 %v112
    %v257 = vunpack.c.l.b16 %v113
    %v258 = vunpack.c.l.b16 %v114
    %v259 = vunpack.c.l.b16 %v115
    %v260 = vunpack.c.l.b16 %v116
    %v261 = vunpack.c.l.b16 %v117
    %v262 = vunpack.c.l.b16 %v118
    %v263 = vunpack.c.l.b16 %v119
    %v264 = vunpack.c.l.b16 %v120
    %v265 = vunpack.c.l.b16 %v121
    %v266 = vunpack.c.l.b16 %v122
    %v267 = vunpack.c.l.b16 %v123
    %v268 = vunpack.c.l.b16 %v124
    %v269 = vunpack.c.l.b16 %v125
    %v270 = vunpack.c.l.b16 %v126
    %v271 = vpack.c.b16 %v208, %v207
    %v272 = vpack.c.b16 %v210, %v209
    %v273 = vpack.c.b16 %v212, %v211
    %v274 = vpack.c.b16 %v214, %v213
    %v275 = vpack.c.b16 %v216, %v215
    %v276 = vpack.c.b16 %v218, %v217
    %v277 = vpack.c.b16 %v220, %v219
    %v278 = vpack.c.b16 %v222, %v221
    %v279 = vpack.c.b16 %v224, %v223
    %v280 = vpack.c.b16 %v226, %v225
    %v281 = vpack.c.b16 %v228, %v227
    %v282 = vpack.c.b16 %v230, %v229
    %v283 = vpack.c.b16 %v232, %v231
    %v284 = vpack.c.b16 %v234, %v233
    %v285 = vpack.c.b16 %v236, %v235
    %v286 = vpack.c.b16 %v238, %v237
    %v287 = vpack.c.b16 %v240, %v239
    %v288 = vpack.c.b16 %v242, %v241
    %v289 = vpack.c.b16 %v244, %v243
    %v290 = vpack.c.b16 %v246, %v245
    %v291 = vpack.c.b16 %v248, %v247
    %v292 = vpack.c.b16 %v250, %v249
    %v293 = vpack.c.b16 %v252, %v251
    %v294 = vpack.c.b16 %v254, %v253
    %v295 = vpack.c.b16 %v256, %v255
    %v296 = vpack.c.b16 %v258, %v257
    %v297 = vpack.c.b16 %v260, %v259
    %v298 = vpack.c.b16 %v262, %v261
    %v299 = vpack.c.b16 %v264, %v263
    %v300 = vpack.c.b16 %v266, %v265
    %v301 = vpack.c.b16 %v268, %v267
    %v302 = vpack.c.b16 %v270, %v269
    %v351 = vunpack.c.l.b16 %v127
    %v352 = vunpack.c.l.b16 %v128
    %v353 = vunpack.c.l.b16 %v129
    %v354 = vunpack.c.l.b16 %v130
    %v355 = vunpack.c.l.b16 %v131
    %v356 = vunpack.c.l.b16 %v132
    %v357 = vunpack.c.l.b16 %v133
    %v358 = vunpack.c.l.b16 %v134
    %v359 = vunpack.c.l.b16 %v135
    %v360 = vunpack.c.l.b16 %v136
    %v361 = vunpack.c.l.b16 %v137
    %v362 = vunpack.c.l.b16 %v138
    %v363 = vunpack.c.l.b16 %v139
    %v364 = vunpack.c.l.b16 %v140
    %v365 = vunpack.c.l.b16 %v141
    %v366 = vunpack.c.l.b16 %v142
    %v367 = vpack.c.b16 %v352, %v351
    %v368 = vpack.c.b16 %v354, %v353
    %v369 = vpack.c.b16 %v356, %v355
    %v370 = vpack.c.b16 %v358, %v357
    %v371 = vpack.c.b16 %v360, %v359
    %v372 = vpack.c.b16 %v362, %v361
    %v373 = vpack.c.b16 %v364, %v363
    %v374 = vpack.c.b16 %v366, %v365
    %383 = vmatprep.subr.bf16.mxu0 0
    %384 = vmatpush1.bf16.msra.mxu0 %v374
    %385 = vmatprep.subr.bf16.mxu0 0
    %386 = vmatpush1.bf16.msra.mxu0 %v373
    %387 = vmatprep.subr.bf16.mxu0 0
    %388 = vmatpush1.bf16.msra.mxu0 %v372
    %389 = vmatprep.subr.bf16.mxu0 0
    %390 = vmatpush1.bf16.msra.mxu0 %v371
    %391 = vmatprep.subr.bf16.mxu0 0
    %392 = vmatpush1.bf16.msra.mxu0 %v370
    %393 = vmatprep.subr.bf16.mxu0 0
    %394 = vmatpush1.bf16.msra.mxu0 %v369
    %395 = vmatprep.subr.bf16.mxu0 0
    %396 = vmatpush1.bf16.msra.mxu0 %v368
    %397 = vmatprep.subr.bf16.mxu0 0
    %398 = vmatpush1.bf16.msra.mxu0 %v367
    %399 = vmatprep.subr.bf16.mxu0 0
    %400 = vmatpush2.bf16.msra.mxu0 0
    %401 = vmatprep.subr.bf16.mxu0 0
    %402 = vmatpush2.bf16.msra.mxu0 0
    %403 = vmatprep.subr.bf16.mxu0 0
    %404 = vmatpush2.bf16.msra.mxu0 0
    %405 = vmatprep.subr.bf16.mxu0 0
    %406 = vmatpush2.bf16.msra.mxu0 0
    %407 = vmatprep.subr.bf16.mxu0 0
    %408 = vmatpush2.bf16.msra.mxu0 0
    %409 = vmatprep.subr.bf16.mxu0 0
    %410 = vmatpush2.bf16.msra.mxu0 0
    %411 = vmatprep.subr.bf16.mxu0 0
    %412 = vmatpush2.bf16.msra.mxu0 0
    %413 = vmatprep.subr.bf16.mxu0 0
    %414 = vmatpush2.bf16.msra.mxu0 0
    %415 = vmatprep.mubr.bf16.mxu0 0
    %416 = vmatmul.mubr.bf16.gmra.mxu0 %v271
    %v417 = vpop.f32.mrf.mxu0
    %v418 = vadd.f32 0.0, %v417
    %v419 = vpop.f32.mrf.mxu0
    %v420 = vpop.f32.mrf.mxu0
    %v421 = vadd.f32 0.0, %v420
    %v422 = vpop.f32.mrf.mxu0
    %423 = vmatprep.mubr.bf16.mxu0 0
    %424 = vmatmul.mubr.bf16.gmra.mxu0 %v272
    %v425 = vpop.f32.mrf.mxu0
    %v426 = vadd.f32 0.0, %v425
    %v427 = vpop.f32.mrf.mxu0
    %v428 = vpop.f32.mrf.mxu0
    %v429 = vadd.f32 0.0, %v428
    %v430 = vpop.f32.mrf.mxu0
    %431 = vmatprep.mubr.bf16.mxu0 0
    %432 = vmatmul.mubr.bf16.gmra.mxu0 %v273
    %v433 = vpop.f32.mrf.mxu0
    %v434 = vadd.f32 0.0, %v433
    %v435 = vpop.f32.mrf.mxu0
    %v436 = vpop.f32.mrf.mxu0
    %v437 = vadd.f32 0.0, %v436
    %v438 = vpop.f32.mrf.mxu0
    %439 = vmatprep.mubr.bf16.mxu0 0
    %440 = vmatmul.mubr.bf16.gmra.mxu0 %v274
    %v441 = vpop.f32.mrf.mxu0
    %v442 = vadd.f32 0.0, %v441
    %v443 = vpop.f32.mrf.mxu0
    %v444 = vpop.f32.mrf.mxu0
    %v445 = vadd.f32 0.0, %v444
    %v446 = vpop.f32.mrf.mxu0
    %447 = vmatprep.mubr.bf16.mxu0 0
    %448 = vmatmul.mubr.bf16.gmra.mxu0 %v275
    %v449 = vpop.f32.mrf.mxu0
    %v450 = vadd.f32 0.0, %v449
    %v451 = vpop.f32.mrf.mxu0
    %v452 = vpop.f32.mrf.mxu0
    %v453 = vadd.f32 0.0, %v452
    %v454 = vpop.f32.mrf.mxu0
    %455 = vmatprep.mubr.bf16.mxu0 0
    %456 = vmatmul.mubr.bf16.gmra.mxu0 %v276
    %v457 = vpop.f32.mrf.mxu0
    %v458 = vadd.f32 0.0, %v457
    %v459 = vpop.f32.mrf.mxu0
    %v460 = vpop.f32.mrf.mxu0
    %v461 = vadd.f32 0.0, %v460
    %v462 = vpop.f32.mrf.mxu0
    %463 = vmatprep.mubr.bf16.mxu0 0
    %464 = vmatmul.mubr.bf16.gmra.mxu0 %v277
    %v465 = vpop.f32.mrf.mxu0
    %v466 = vadd.f32 0.0, %v465
    %v467 = vpop.f32.mrf.mxu0
    %v468 = vpop.f32.mrf.mxu0
    %v469 = vadd.f32 0.0, %v468
    %v470 = vpop.f32.mrf.mxu0
    %471 = vmatprep.mubr.bf16.mxu0 0
    %472 = vmatmul.mubr.bf16.gmra.mxu0 %v278
    %v473 = vpop.f32.mrf.mxu0
    %v474 = vadd.f32 0.0, %v473
    %v475 = vpop.f32.mrf.mxu0
    %v476 = vpop.f32.mrf.mxu0
    %v477 = vadd.f32 0.0, %v476
    %v478 = vpop.f32.mrf.mxu0
    %479 = vmatprep.mubr.bf16.mxu0 0
    %480 = vmatmul.mubr.bf16.gmra.mxu0 %v279
    %v481 = vpop.f32.mrf.mxu0
    %v482 = vadd.f32 0.0, %v481
    %v483 = vpop.f32.mrf.mxu0
    %v484 = vpop.f32.mrf.mxu0
    %v485 = vadd.f32 0.0, %v484
    %v486 = vpop.f32.mrf.mxu0
    %487 = vmatprep.mubr.bf16.mxu0 0
    %488 = vmatmul.mubr.bf16.gmra.mxu0 %v280
    %v489 = vpop.f32.mrf.mxu0
    %v490 = vadd.f32 0.0, %v489
    %v491 = vpop.f32.mrf.mxu0
    %v492 = vpop.f32.mrf.mxu0
    %v493 = vadd.f32 0.0, %v492
    %v494 = vpop.f32.mrf.mxu0
    %495 = vmatprep.mubr.bf16.mxu0 0
    %496 = vmatmul.mubr.bf16.gmra.mxu0 %v281
    %v497 = vpop.f32.mrf.mxu0
    %v498 = vadd.f32 0.0, %v497
    %v499 = vpop.f32.mrf.mxu0
    %v500 = vpop.f32.mrf.mxu0
    %v501 = vadd.f32 0.0, %v500
    %v502 = vpop.f32.mrf.mxu0
    %503 = vmatprep.mubr.bf16.mxu0 0
    %504 = vmatmul.mubr.bf16.gmra.mxu0 %v282
    %v505 = vpop.f32.mrf.mxu0
    %v506 = vadd.f32 0.0, %v505
    %v507 = vpop.f32.mrf.mxu0
    %v508 = vpop.f32.mrf.mxu0
    %v509 = vadd.f32 0.0, %v508
    %v510 = vpop.f32.mrf.mxu0
    %511 = vmatprep.mubr.bf16.mxu0 0
    %512 = vmatmul.mubr.bf16.gmra.mxu0 %v283
    %v513 = vpop.f32.mrf.mxu0
    %v514 = vadd.f32 0.0, %v513
    %v515 = vpop.f32.mrf.mxu0
    %v516 = vpop.f32.mrf.mxu0
    %v517 = vadd.f32 0.0, %v516
    %v518 = vpop.f32.mrf.mxu0
    %519 = vmatprep.mubr.bf16.mxu0 0
    %520 = vmatmul.mubr.bf16.gmra.mxu0 %v284
    %v521 = vpop.f32.mrf.mxu0
    %v522 = vadd.f32 0.0, %v521
    %v523 = vpop.f32.mrf.mxu0
    %v524 = vpop.f32.mrf.mxu0
    %v525 = vadd.f32 0.0, %v524
    %v526 = vpop.f32.mrf.mxu0
    %527 = vmatprep.mubr.bf16.mxu0 0
    %528 = vmatmul.mubr.bf16.gmra.mxu0 %v285
    %v529 = vpop.f32.mrf.mxu0
    %v530 = vadd.f32 0.0, %v529
    %v531 = vpop.f32.mrf.mxu0
    %v532 = vpop.f32.mrf.mxu0
    %v533 = vadd.f32 0.0, %v532
    %v534 = vpop.f32.mrf.mxu0
    %535 = vmatprep.mubr.bf16.mxu0 0
    %536 = vmatmul.mubr.bf16.gmra.mxu0 %v286
    %v537 = vpop.f32.mrf.mxu0
    %v538 = vadd.f32 0.0, %v537
    %v539 = vpop.f32.mrf.mxu0
    %v540 = vpop.f32.mrf.mxu0
    %v541 = vadd.f32 0.0, %v540
    %v542 = vpop.f32.mrf.mxu0
    %543 = vmatprep.mubr.bf16.mxu0 0
    %544 = vmatmul.mubr.bf16.gmra.mxu0 %v287
    %v545 = vpop.f32.mrf.mxu0
    %v546 = vadd.f32 0.0, %v545
    %v547 = vpop.f32.mrf.mxu0
    %v548 = vpop.f32.mrf.mxu0
    %v549 = vadd.f32 0.0, %v548
    %v550 = vpop.f32.mrf.mxu0
    %551 = vmatprep.mubr.bf16.mxu0 0
    %552 = vmatmul.mubr.bf16.gmra.mxu0 %v288
    %v553 = vpop.f32.mrf.mxu0
    %v554 = vadd.f32 0.0, %v553
    %v555 = vpop.f32.mrf.mxu0
    %v556 = vpop.f32.mrf.mxu0
    %v557 = vadd.f32 0.0, %v556
    %v558 = vpop.f32.mrf.mxu0
    %559 = vmatprep.mubr.bf16.mxu0 0
    %560 = vmatmul.mubr.bf16.gmra.mxu0 %v289
    %v561 = vpop.f32.mrf.mxu0
    %v562 = vadd.f32 0.0, %v561
    %v563 = vpop.f32.mrf.mxu0
    %v564 = vpop.f32.mrf.mxu0
    %v565 = vadd.f32 0.0, %v564
    %v566 = vpop.f32.mrf.mxu0
    %567 = vmatprep.mubr.bf16.mxu0 0
    %568 = vmatmul.mubr.bf16.gmra.mxu0 %v290
    %v569 = vpop.f32.mrf.mxu0
    %v570 = vadd.f32 0.0, %v569
    %v571 = vpop.f32.mrf.mxu0
    %v572 = vpop.f32.mrf.mxu0
    %v573 = vadd.f32 0.0, %v572
    %v574 = vpop.f32.mrf.mxu0
    %575 = vmatprep.mubr.bf16.mxu0 0
    %576 = vmatmul.mubr.bf16.gmra.mxu0 %v291
    %v577 = vpop.f32.mrf.mxu0
    %v578 = vadd.f32 0.0, %v577
    %v579 = vpop.f32.mrf.mxu0
    %v580 = vpop.f32.mrf.mxu0
    %v581 = vadd.f32 0.0, %v580
    %v582 = vpop.f32.mrf.mxu0
    %583 = vmatprep.mubr.bf16.mxu0 0
    %584 = vmatmul.mubr.bf16.gmra.mxu0 %v292
    %v585 = vpop.f32.mrf.mxu0
    %v586 = vadd.f32 0.0, %v585
    %v587 = vpop.f32.mrf.mxu0
    %v588 = vpop.f32.mrf.mxu0
    %v589 = vadd.f32 0.0, %v588
    %v590 = vpop.f32.mrf.mxu0
    %591 = vmatprep.mubr.bf16.mxu0 0
    %592 = vmatmul.mubr.bf16.gmra.mxu0 %v293
    %v593 = vpop.f32.mrf.mxu0
    %v594 = vadd.f32 0.0, %v593
    %v595 = vpop.f32.mrf.mxu0
    %v596 = vpop.f32.mrf.mxu0
    %v597 = vadd.f32 0.0, %v596
    %v598 = vpop.f32.mrf.mxu0
    %599 = vmatprep.mubr.bf16.mxu0 0
    %600 = vmatmul.mubr.bf16.gmra.mxu0 %v294
    %v601 = vpop.f32.mrf.mxu0
    %v602 = vadd.f32 0.0, %v601
    %v603 = vpop.f32.mrf.mxu0
    %v604 = vpop.f32.mrf.mxu0
    %v605 = vadd.f32 0.0, %v604
    %v606 = vpop.f32.mrf.mxu0
    %607 = vmatprep.mubr.bf16.mxu0 0
    %608 = vmatmul.mubr.bf16.gmra.mxu0 %v295
    %v609 = vpop.f32.mrf.mxu0
    %v610 = vadd.f32 0.0, %v609
    %v611 = vpop.f32.mrf.mxu0
    %v612 = vpop.f32.mrf.mxu0
    %v613 = vadd.f32 0.0, %v612
    %v614 = vpop.f32.mrf.mxu0
    %615 = vmatprep.mubr.bf16.mxu0 0
    %616 = vmatmul.mubr.bf16.gmra.mxu0 %v296
    %v617 = vpop.f32.mrf.mxu0
    %v618 = vadd.f32 0.0, %v617
    %v619 = vpop.f32.mrf.mxu0
    %v620 = vpop.f32.mrf.mxu0
    %v621 = vadd.f32 0.0, %v620
    %v622 = vpop.f32.mrf.mxu0
    %623 = vmatprep.mubr.bf16.mxu0 0
    %624 = vmatmul.mubr.bf16.gmra.mxu0 %v297
    %v625 = vpop.f32.mrf.mxu0
    %v626 = vadd.f32 0.0, %v625
    %v627 = vpop.f32.mrf.mxu0
    %v628 = vpop.f32.mrf.mxu0
    %v629 = vadd.f32 0.0, %v628
    %v630 = vpop.f32.mrf.mxu0
    %631 = vmatprep.mubr.bf16.mxu0 0
    %632 = vmatmul.mubr.bf16.gmra.mxu0 %v298
    %v633 = vpop.f32.mrf.mxu0
    %v634 = vadd.f32 0.0, %v633
    %v635 = vpop.f32.mrf.mxu0
    %v636 = vpop.f32.mrf.mxu0
    %v637 = vadd.f32 0.0, %v636
    %v638 = vpop.f32.mrf.mxu0
    %639 = vmatprep.mubr.bf16.mxu0 0
    %640 = vmatmul.mubr.bf16.gmra.mxu0 %v299
    %v641 = vpop.f32.mrf.mxu0
    %v642 = vadd.f32 0.0, %v641
    %v643 = vpop.f32.mrf.mxu0
    %v644 = vpop.f32.mrf.mxu0
    %v645 = vadd.f32 0.0, %v644
    %v646 = vpop.f32.mrf.mxu0
    %647 = vmatprep.mubr.bf16.mxu0 0
    %648 = vmatmul.mubr.bf16.gmra.mxu0 %v300
    %v649 = vpop.f32.mrf.mxu0
    %v650 = vadd.f32 0.0, %v649
    %v651 = vpop.f32.mrf.mxu0
    %v652 = vpop.f32.mrf.mxu0
    %v653 = vadd.f32 0.0, %v652
    %v654 = vpop.f32.mrf.mxu0
    %655 = vmatprep.mubr.bf16.mxu0 0
    %656 = vmatmul.mubr.bf16.gmra.mxu0 %v301
    %v657 = vpop.f32.mrf.mxu0
    %v658 = vadd.f32 0.0, %v657
    %v659 = vpop.f32.mrf.mxu0
    %v660 = vpop.f32.mrf.mxu0
    %v661 = vadd.f32 0.0, %v660
    %v662 = vpop.f32.mrf.mxu0
    %663 = vmatprep.mubr.bf16.mxu0 0
    %664 = vmatmul.mubr.bf16.gmra.mxu0 %v302
    %v665 = vpop.f32.mrf.mxu0
    %v666 = vadd.f32 0.0, %v665
    %v667 = vpop.f32.mrf.mxu0
    %v668 = vpop.f32.mrf.mxu0
    %v669 = vadd.f32 0.0, %v668
    %v670 = vpop.f32.mrf.mxu0
    %671 = vdwg.mxu0
    %v672 = vpack.c.bf16 %v421, %v418
    %v673 = vpack.c.bf16 %v429, %v426
    %v674 = vpack.c.bf16 %v437, %v434
    %v675 = vpack.c.bf16 %v445, %v442
    %v676 = vpack.c.bf16 %v453, %v450
    %v677 = vpack.c.bf16 %v461, %v458
    %v678 = vpack.c.bf16 %v469, %v466
    %v679 = vpack.c.bf16 %v477, %v474
    %v680 = vpack.c.bf16 %v485, %v482
    %v681 = vpack.c.bf16 %v493, %v490
    %v682 = vpack.c.bf16 %v501, %v498
    %v683 = vpack.c.bf16 %v509, %v506
    %v684 = vpack.c.bf16 %v517, %v514
    %v685 = vpack.c.bf16 %v525, %v522
    %v686 = vpack.c.bf16 %v533, %v530
    %v687 = vpack.c.bf16 %v541, %v538
    %v688 = vpack.c.bf16 %v549, %v546
    %v689 = vpack.c.bf16 %v557, %v554
    %v690 = vpack.c.bf16 %v565, %v562
    %v691 = vpack.c.bf16 %v573, %v570
    %v692 = vpack.c.bf16 %v581, %v578
    %v693 = vpack.c.bf16 %v589, %v586
    %v694 = vpack.c.bf16 %v597, %v594
    %v695 = vpack.c.bf16 %v605, %v602
    %v696 = vpack.c.bf16 %v613, %v610
    %v697 = vpack.c.bf16 %v621, %v618
    %v698 = vpack.c.bf16 %v629, %v626
    %v699 = vpack.c.bf16 %v637, %v634
    %v700 = vpack.c.bf16 %v645, %v642
    %v701 = vpack.c.bf16 %v653, %v650
    %v702 = vpack.c.bf16 %v661, %v658
    %v703 = vpack.c.bf16 %v669, %v666
    %v736 = vunpack.c.l.b16 %v672
    %v737 = vunpack.c.h.b16 %v672
    %v738 = vunpack.c.l.b16 %v673
    %v739 = vunpack.c.h.b16 %v673
    %v740 = vunpack.c.l.b16 %v674
    %v741 = vunpack.c.h.b16 %v674
    %v742 = vunpack.c.l.b16 %v675
    %v743 = vunpack.c.h.b16 %v675
    %v744 = vunpack.c.l.b16 %v676
    %v745 = vunpack.c.h.b16 %v676
    %v746 = vunpack.c.l.b16 %v677
    %v747 = vunpack.c.h.b16 %v677
    %v748 = vunpack.c.l.b16 %v678
    %v749 = vunpack.c.h.b16 %v678
    %v750 = vunpack.c.l.b16 %v679
    %v751 = vunpack.c.h.b16 %v679
    %v752 = vunpack.c.l.b16 %v680
    %v753 = vunpack.c.h.b16 %v680
    %v754 = vunpack.c.l.b16 %v681
    %v755 = vunpack.c.h.b16 %v681
    %v756 = vunpack.c.l.b16 %v682
    %v757 = vunpack.c.h.b16 %v682
    %v758 = vunpack.c.l.b16 %v683
    %v759 = vunpack.c.h.b16 %v683
    %v760 = vunpack.c.l.b16 %v684
    %v761 = vunpack.c.h.b16 %v684
    %v762 = vunpack.c.l.b16 %v685
    %v763 = vunpack.c.h.b16 %v685
    %v764 = vunpack.c.l.b16 %v686
    %v765 = vunpack.c.h.b16 %v686
    %v766 = vunpack.c.l.b16 %v687
    %v767 = vunpack.c.h.b16 %v687
    %v768 = vunpack.c.l.b16 %v688
    %v769 = vunpack.c.h.b16 %v688
    %v770 = vunpack.c.l.b16 %v689
    %v771 = vunpack.c.h.b16 %v689
    %v772 = vunpack.c.l.b16 %v690
    %v773 = vunpack.c.h.b16 %v690
    %v774 = vunpack.c.l.b16 %v691
    %v775 = vunpack.c.h.b16 %v691
    %v776 = vunpack.c.l.b16 %v692
    %v777 = vunpack.c.h.b16 %v692
    %v778 = vunpack.c.l.b16 %v693
    %v779 = vunpack.c.h.b16 %v693
    %v780 = vunpack.c.l.b16 %v694
    %v781 = vunpack.c.h.b16 %v694
    %v782 = vunpack.c.l.b16 %v695
    %v783 = vunpack.c.h.b16 %v695
    %v784 = vunpack.c.l.b16 %v696
    %v785 = vunpack.c.h.b16 %v696
    %v786 = vunpack.c.l.b16 %v697
    %v787 = vunpack.c.h.b16 %v697
    %v788 = vunpack.c.l.b16 %v698
    %v789 = vunpack.c.h.b16 %v698
    %v790 = vunpack.c.l.b16 %v699
    %v791 = vunpack.c.h.b16 %v699
    %v792 = vunpack.c.l.b16 %v700
    %v793 = vunpack.c.h.b16 %v700
    %v794 = vunpack.c.l.b16 %v701
    %v795 = vunpack.c.h.b16 %v701
    %v796 = vunpack.c.l.b16 %v702
    %v797 = vunpack.c.h.b16 %v702
    %v798 = vunpack.c.l.b16 %v703
    %v799 = vunpack.c.h.b16 %v703
    %v800 = vpack.c.b16 %v736, %v736
    %v801 = vpack.c.b16 %v737, %v737
    %v802 = vpack.c.b16 %v738, %v738
    %v803 = vpack.c.b16 %v739, %v739
    %v804 = vpack.c.b16 %v740, %v740
    %v805 = vpack.c.b16 %v741, %v741
    %v806 = vpack.c.b16 %v742, %v742
    %v807 = vpack.c.b16 %v743, %v743
    %v808 = vpack.c.b16 %v744, %v744
    %v809 = vpack.c.b16 %v745, %v745
    %v810 = vpack.c.b16 %v746, %v746
    %v811 = vpack.c.b16 %v747, %v747
    %v812 = vpack.c.b16 %v748, %v748
    %v813 = vpack.c.b16 %v749, %v749
    %v814 = vpack.c.b16 %v750, %v750
    %v815 = vpack.c.b16 %v751, %v751
    %v816 = vpack.c.b16 %v752, %v752
    %v817 = vpack.c.b16 %v753, %v753
    %v818 = vpack.c.b16 %v754, %v754
    %v819 = vpack.c.b16 %v755, %v755
    %v820 = vpack.c.b16 %v756, %v756
    %v821 = vpack.c.b16 %v757, %v757
    %v822 = vpack.c.b16 %v758, %v758
    %v823 = vpack.c.b16 %v759, %v759
    %v824 = vpack.c.b16 %v760, %v760
    %v825 = vpack.c.b16 %v761, %v761
    %v826 = vpack.c.b16 %v762, %v762
    %v827 = vpack.c.b16 %v763, %v763
    %v828 = vpack.c.b16 %v764, %v764
    %v829 = vpack.c.b16 %v765, %v765
    %v830 = vpack.c.b16 %v766, %v766
    %v831 = vpack.c.b16 %v767, %v767
    %v832 = vpack.c.b16 %v768, %v768
    %v833 = vpack.c.b16 %v769, %v769
    %v834 = vpack.c.b16 %v770, %v770
    %v835 = vpack.c.b16 %v771, %v771
    %v836 = vpack.c.b16 %v772, %v772
    %v837 = vpack.c.b16 %v773, %v773
    %v838 = vpack.c.b16 %v774, %v774
    %v839 = vpack.c.b16 %v775, %v775
    %v840 = vpack.c.b16 %v776, %v776
    %v841 = vpack.c.b16 %v777, %v777
    %v842 = vpack.c.b16 %v778, %v778
    %v843 = vpack.c.b16 %v779, %v779
    %v844 = vpack.c.b16 %v780, %v780
    %v845 = vpack.c.b16 %v781, %v781
    %v846 = vpack.c.b16 %v782, %v782
    %v847 = vpack.c.b16 %v783, %v783
    %v848 = vpack.c.b16 %v784, %v784
    %v849 = vpack.c.b16 %v785, %v785
    %v850 = vpack.c.b16 %v786, %v786
    %v851 = vpack.c.b16 %v787, %v787
    %v852 = vpack.c.b16 %v788, %v788
    %v853 = vpack.c.b16 %v789, %v789
    %v854 = vpack.c.b16 %v790, %v790
    %v855 = vpack.c.b16 %v791, %v791
    %v856 = vpack.c.b16 %v792, %v792
    %v857 = vpack.c.b16 %v793, %v793
    %v858 = vpack.c.b16 %v794, %v794
    %v859 = vpack.c.b16 %v795, %v795
    %v860 = vpack.c.b16 %v796, %v796
    %v861 = vpack.c.b16 %v797, %v797
    %v862 = vpack.c.b16 %v798, %v798
    %v863 = vpack.c.b16 %v799, %v799
    %928 = vst [vmem:[#allocation8] sm:$0xf] %v800
    %929 = vst [vmem:[#allocation8 + $0x4] sm:$0xf] %v801
    %930 = vst [vmem:[#allocation8 + $0x8] sm:$0xf] %v802
    %931 = vst [vmem:[#allocation8 + $0xc] sm:$0xf] %v803
    %932 = vst [vmem:[#allocation8 + $0x10] sm:$0xf] %v804
    %933 = vst [vmem:[#allocation8 + $0x14] sm:$0xf] %v805
    %934 = vst [vmem:[#allocation8 + $0x18] sm:$0xf] %v806
    %935 = vst [vmem:[#allocation8 + $0x1c] sm:$0xf] %v807
    %936 = vst [vmem:[#allocation8 + $0x20] sm:$0xf] %v808
    %937 = vst [vmem:[#allocation8 + $0x24] sm:$0xf] %v809
    %938 = vst [vmem:[#allocation8 + $0x28] sm:$0xf] %v810
    %939 = vst [vmem:[#allocation8 + $0x2c] sm:$0xf] %v811
    %940 = vst [vmem:[#allocation8 + $0x30] sm:$0xf] %v812
    %941 = vst [vmem:[#allocation8 + $0x34] sm:$0xf] %v813
    %942 = vst [vmem:[#allocation8 + $0x38] sm:$0xf] %v814
    %943 = vst [vmem:[#allocation8 + $0x3c] sm:$0xf] %v815
    %944 = vst [vmem:[#allocation8 + $0x40] sm:$0xf] %v816
    %945 = vst [vmem:[#allocation8 + $0x44] sm:$0xf] %v817
    %946 = vst [vmem:[#allocation8 + $0x48] sm:$0xf] %v818
    %947 = vst [vmem:[#allocation8 + $0x4c] sm:$0xf] %v819
    %948 = vst [vmem:[#allocation8 + $0x50] sm:$0xf] %v820
    %949 = vst [vmem:[#allocation8 + $0x54] sm:$0xf] %v821
    %950 = vst [vmem:[#allocation8 + $0x58] sm:$0xf] %v822
    %951 = vst [vmem:[#allocation8 + $0x5c] sm:$0xf] %v823
    %952 = vst [vmem:[#allocation8 + $0x60] sm:$0xf] %v824
    %953 = vst [vmem:[#allocation8 + $0x64] sm:$0xf] %v825
    %954 = vst [vmem:[#allocation8 + $0x68] sm:$0xf] %v826
    %955 = vst [vmem:[#allocation8 + $0x6c] sm:$0xf] %v827
    %956 = vst [vmem:[#allocation8 + $0x70] sm:$0xf] %v828
    %957 = vst [vmem:[#allocation8 + $0x74] sm:$0xf] %v829
    %958 = vst [vmem:[#allocation8 + $0x78] sm:$0xf] %v830
    %959 = vst [vmem:[#allocation8 + $0x7c] sm:$0xf] %v831
    %960 = vst [vmem:[#allocation8 + $0x80] sm:$0xf] %v832
    %961 = vst [vmem:[#allocation8 + $0x84] sm:$0xf] %v833
    %962 = vst [vmem:[#allocation8 + $0x88] sm:$0xf] %v834
    %963 = vst [vmem:[#allocation8 + $0x8c] sm:$0xf] %v835
    %964 = vst [vmem:[#allocation8 + $0x90] sm:$0xf] %v836
    %965 = vst [vmem:[#allocation8 + $0x94] sm:$0xf] %v837
    %966 = vst [vmem:[#allocation8 + $0x98] sm:$0xf] %v838
    %967 = vst [vmem:[#allocation8 + $0x9c] sm:$0xf] %v839
    %968 = vst [vmem:[#allocation8 + $0xa0] sm:$0xf] %v840
    %969 = vst [vmem:[#allocation8 + $0xa4] sm:$0xf] %v841
    %970 = vst [vmem:[#allocation8 + $0xa8] sm:$0xf] %v842
    %971 = vst [vmem:[#allocation8 + $0xac] sm:$0xf] %v843
    %972 = vst [vmem:[#allocation8 + $0xb0] sm:$0xf] %v844
    %973 = vst [vmem:[#allocation8 + $0xb4] sm:$0xf] %v845
    %974 = vst [vmem:[#allocation8 + $0xb8] sm:$0xf] %v846
    %975 = vst [vmem:[#allocation8 + $0xbc] sm:$0xf] %v847
    %976 = vst [vmem:[#allocation8 + $0xc0] sm:$0xf] %v848
    %977 = vst [vmem:[#allocation8 + $0xc4] sm:$0xf] %v849
    %978 = vst [vmem:[#allocation8 + $0xc8] sm:$0xf] %v850
    %979 = vst [vmem:[#allocation8 + $0xcc] sm:$0xf] %v851
    %980 = vst [vmem:[#allocation8 + $0xd0] sm:$0xf] %v852
    %981 = vst [vmem:[#allocation8 + $0xd4] sm:$0xf] %v853
    %982 = vst [vmem:[#allocation8 + $0xd8] sm:$0xf] %v854
    %983 = vst [vmem:[#allocation8 + $0xdc] sm:$0xf] %v855
    %984 = vst [vmem:[#allocation8 + $0xe0] sm:$0xf] %v856
    %985 = vst [vmem:[#allocation8 + $0xe4] sm:$0xf] %v857
    %986 = vst [vmem:[#allocation8 + $0xe8] sm:$0xf] %v858
    %987 = vst [vmem:[#allocation8 + $0xec] sm:$0xf] %v859
    %988 = vst [vmem:[#allocation8 + $0xf0] sm:$0xf] %v860
    %989 = vst [vmem:[#allocation8 + $0xf4] sm:$0xf] %v861
    %990 = vst [vmem:[#allocation8 + $0xf8] sm:$0xf] %v862
    %991 = vst [vmem:[#allocation8 + $0xfc] sm:$0xf] %v863
    %v992 = vld [vmem:[#allocation7] sm:$0xf]
    %v993 = vld [vmem:[#allocation7 + $0x4] sm:$0xf]
    %v994 = vld [vmem:[#allocation7 + $0x8] sm:$0xf]
    %v995 = vld [vmem:[#allocation7 + $0xc] sm:$0xf]
    %v996 = vld [vmem:[#allocation7 + $0x10] sm:$0xf]
    %v997 = vld [vmem:[#allocation7 + $0x14] sm:$0xf]
    %v998 = vld [vmem:[#allocation7 + $0x18] sm:$0xf]
    %v999 = vld [vmem:[#allocation7 + $0x1c] sm:$0xf]
    %v1000 = vld [vmem:[#allocation7 + $0x20] sm:$0xf]
    %v1001 = vld [vmem:[#allocation7 + $0x24] sm:$0xf]
    %v1002 = vld [vmem:[#allocation7 + $0x28] sm:$0xf]
    %v1003 = vld [vmem:[#allocation7 + $0x2c] sm:$0xf]
    %v1004 = vld [vmem:[#allocation7 + $0x30] sm:$0xf]
    %v1005 = vld [vmem:[#allocation7 + $0x34] sm:$0xf]
    %v1006 = vld [vmem:[#allocation7 + $0x38] sm:$0xf]
    %v1007 = vld [vmem:[#allocation7 + $0x3c] sm:$0xf]
    %v1008 = vld [vmem:[%s3] sm:$0x1]
    %v1010 = vlaneseq
    %v1011 = vshrl.u32 %v1010, 7
    %v1012 = vsub.s32 0, %v1011
    %v1013 = vrot.slane %v1008, %v1012
    %v1031 = vunpack.c.l.b16 %v992
    %v1032 = vunpack.c.l.b16 %v993
    %v1033 = vunpack.c.l.b16 %v994
    %v1034 = vunpack.c.l.b16 %v995
    %v1035 = vunpack.c.l.b16 %v996
    %v1036 = vunpack.c.l.b16 %v997
    %v1037 = vunpack.c.l.b16 %v998
    %v1038 = vunpack.c.l.b16 %v999
    %v1039 = vunpack.c.l.b16 %v1000
    %v1040 = vunpack.c.l.b16 %v1001
    %v1041 = vunpack.c.l.b16 %v1002
    %v1042 = vunpack.c.l.b16 %v1003
    %v1043 = vunpack.c.l.b16 %v1004
    %v1044 = vunpack.c.l.b16 %v1005
    %v1045 = vunpack.c.l.b16 %v1006
    %v1046 = vunpack.c.l.b16 %v1007
    %v1047 = vpack.c.b16 %v1032, %v1031
    %v1048 = vpack.c.b16 %v1034, %v1033
    %v1049 = vpack.c.b16 %v1036, %v1035
    %v1050 = vpack.c.b16 %v1038, %v1037
    %v1051 = vpack.c.b16 %v1040, %v1039
    %v1052 = vpack.c.b16 %v1042, %v1041
    %v1053 = vpack.c.b16 %v1044, %v1043
    %v1054 = vpack.c.b16 %v1046, %v1045
    %1063 = vmatprep.subr.bf16.mxu0 0
    %1064 = vmatpush1.bf16.msra.mxu0 %v1054
    %1065 = vmatprep.subr.bf16.mxu0 0
    %1066 = vmatpush1.bf16.msra.mxu0 %v1053
    %1067 = vmatprep.subr.bf16.mxu0 0
    %1068 = vmatpush1.bf16.msra.mxu0 %v1052
    %1069 = vmatprep.subr.bf16.mxu0 0
    %1070 = vmatpush1.bf16.msra.mxu0 %v1051
    %1071 = vmatprep.subr.bf16.mxu0 0
    %1072 = vmatpush1.bf16.msra.mxu0 %v1050
    %1073 = vmatprep.subr.bf16.mxu0 0
    %1074 = vmatpush1.bf16.msra.mxu0 %v1049
    %1075 = vmatprep.subr.bf16.mxu0 0
    %1076 = vmatpush1.bf16.msra.mxu0 %v1048
    %1077 = vmatprep.subr.bf16.mxu0 0
    %1078 = vmatpush1.bf16.msra.mxu0 %v1047
    %1079 = vmatprep.subr.bf16.mxu0 0
    %1080 = vmatpush2.bf16.msra.mxu0 0
    %1081 = vmatprep.subr.bf16.mxu0 0
    %1082 = vmatpush2.bf16.msra.mxu0 0
    %1083 = vmatprep.subr.bf16.mxu0 0
    %1084 = vmatpush2.bf16.msra.mxu0 0
    %1085 = vmatprep.subr.bf16.mxu0 0
    %1086 = vmatpush2.bf16.msra.mxu0 0
    %1087 = vmatprep.subr.bf16.mxu0 0
    %1088 = vmatpush2.bf16.msra.mxu0 0
    %1089 = vmatprep.subr.bf16.mxu0 0
    %1090 = vmatpush2.bf16.msra.mxu0 0
    %1091 = vmatprep.subr.bf16.mxu0 0
    %1092 = vmatpush2.bf16.msra.mxu0 0
    %1093 = vmatprep.subr.bf16.mxu0 0
    %1094 = vmatpush2.bf16.msra.mxu0 0
    %1095 = vmatprep.mubr.bf16.mxu0 0
    %1096 = vmatmul.mubr.bf16.gmra.mxu0 %v271
    %v1097 = vpop.f32.mrf.mxu0
    %v1098 = vadd.f32 %v1013, %v1097
    %v1099 = vpop.f32.mrf.mxu0
    %v1100 = vpop.f32.mrf.mxu0
    %v1101 = vadd.f32 %v1013, %v1100
    %v1102 = vpop.f32.mrf.mxu0
    %1103 = vmatprep.mubr.bf16.mxu0 0
    %1104 = vmatmul.mubr.bf16.gmra.mxu0 %v272
    %v1105 = vpop.f32.mrf.mxu0
    %v1106 = vadd.f32 %v1013, %v1105
    %v1107 = vpop.f32.mrf.mxu0
    %v1108 = vpop.f32.mrf.mxu0
    %v1109 = vadd.f32 %v1013, %v1108
    %v1110 = vpop.f32.mrf.mxu0
    %1111 = vmatprep.mubr.bf16.mxu0 0
    %1112 = vmatmul.mubr.bf16.gmra.mxu0 %v273
    %v1113 = vpop.f32.mrf.mxu0
    %v1114 = vadd.f32 %v1013, %v1113
    %v1115 = vpop.f32.mrf.mxu0
    %v1116 = vpop.f32.mrf.mxu0
    %v1117 = vadd.f32 %v1013, %v1116
    %v1118 = vpop.f32.mrf.mxu0
    %1119 = vmatprep.mubr.bf16.mxu0 0
    %1120 = vmatmul.mubr.bf16.gmra.mxu0 %v274
    %v1121 = vpop.f32.mrf.mxu0
    %v1122 = vadd.f32 %v1013, %v1121
    %v1123 = vpop.f32.mrf.mxu0
    %v1124 = vpop.f32.mrf.mxu0
    %v1125 = vadd.f32 %v1013, %v1124
    %v1126 = vpop.f32.mrf.mxu0
    %1127 = vmatprep.mubr.bf16.mxu0 0
    %1128 = vmatmul.mubr.bf16.gmra.mxu0 %v275
    %v1129 = vpop.f32.mrf.mxu0
    %v1130 = vadd.f32 %v1013, %v1129
    %v1131 = vpop.f32.mrf.mxu0
    %v1132 = vpop.f32.mrf.mxu0
    %v1133 = vadd.f32 %v1013, %v1132
    %v1134 = vpop.f32.mrf.mxu0
    %1135 = vmatprep.mubr.bf16.mxu0 0
    %1136 = vmatmul.mubr.bf16.gmra.mxu0 %v276
    %v1137 = vpop.f32.mrf.mxu0
    %v1138 = vadd.f32 %v1013, %v1137
    %v1139 = vpop.f32.mrf.mxu0
    %v1140 = vpop.f32.mrf.mxu0
    %v1141 = vadd.f32 %v1013, %v1140
    %v1142 = vpop.f32.mrf.mxu0
    %1143 = vmatprep.mubr.bf16.mxu0 0
    %1144 = vmatmul.mubr.bf16.gmra.mxu0 %v277
    %v1145 = vpop.f32.mrf.mxu0
    %v1146 = vadd.f32 %v1013, %v1145
    %v1147 = vpop.f32.mrf.mxu0
    %v1148 = vpop.f32.mrf.mxu0
    %v1149 = vadd.f32 %v1013, %v1148
    %v1150 = vpop.f32.mrf.mxu0
    %1151 = vmatprep.mubr.bf16.mxu0 0
    %1152 = vmatmul.mubr.bf16.gmra.mxu0 %v278
    %v1153 = vpop.f32.mrf.mxu0
    %v1154 = vadd.f32 %v1013, %v1153
    %v1155 = vpop.f32.mrf.mxu0
    %v1156 = vpop.f32.mrf.mxu0
    %v1157 = vadd.f32 %v1013, %v1156
    %v1158 = vpop.f32.mrf.mxu0
    %1159 = vmatprep.mubr.bf16.mxu0 0
    %1160 = vmatmul.mubr.bf16.gmra.mxu0 %v279
    %v1161 = vpop.f32.mrf.mxu0
    %v1162 = vadd.f32 %v1013, %v1161
    %v1163 = vpop.f32.mrf.mxu0
    %v1164 = vpop.f32.mrf.mxu0
    %v1165 = vadd.f32 %v1013, %v1164
    %v1166 = vpop.f32.mrf.mxu0
    %1167 = vmatprep.mubr.bf16.mxu0 0
    %1168 = vmatmul.mubr.bf16.gmra.mxu0 %v280
    %v1169 = vpop.f32.mrf.mxu0
    %v1170 = vadd.f32 %v1013, %v1169
    %v1171 = vpop.f32.mrf.mxu0
    %v1172 = vpop.f32.mrf.mxu0
    %v1173 = vadd.f32 %v1013, %v1172
    %v1174 = vpop.f32.mrf.mxu0
    %1175 = vmatprep.mubr.bf16.mxu0 0
    %1176 = vmatmul.mubr.bf16.gmra.mxu0 %v281
    %v1177 = vpop.f32.mrf.mxu0
    %v1178 = vadd.f32 %v1013, %v1177
    %v1179 = vpop.f32.mrf.mxu0
    %v1180 = vpop.f32.mrf.mxu0
    %v1181 = vadd.f32 %v1013, %v1180
    %v1182 = vpop.f32.mrf.mxu0
    %1183 = vmatprep.mubr.bf16.mxu0 0
    %1184 = vmatmul.mubr.bf16.gmra.mxu0 %v282
    %v1185 = vpop.f32.mrf.mxu0
    %v1186 = vadd.f32 %v1013, %v1185
    %v1187 = vpop.f32.mrf.mxu0
    %v1188 = vpop.f32.mrf.mxu0
    %v1189 = vadd.f32 %v1013, %v1188
    %v1190 = vpop.f32.mrf.mxu0
    %1191 = vmatprep.mubr.bf16.mxu0 0
    %1192 = vmatmul.mubr.bf16.gmra.mxu0 %v283
    %v1193 = vpop.f32.mrf.mxu0
    %v1194 = vadd.f32 %v1013, %v1193
    %v1195 = vpop.f32.mrf.mxu0
    %v1196 = vpop.f32.mrf.mxu0
    %v1197 = vadd.f32 %v1013, %v1196
    %v1198 = vpop.f32.mrf.mxu0
    %1199 = vmatprep.mubr.bf16.mxu0 0
    %1200 = vmatmul.mubr.bf16.gmra.mxu0 %v284
    %v1201 = vpop.f32.mrf.mxu0
    %v1202 = vadd.f32 %v1013, %v1201
    %v1203 = vpop.f32.mrf.mxu0
    %v1204 = vpop.f32.mrf.mxu0
    %v1205 = vadd.f32 %v1013, %v1204
    %v1206 = vpop.f32.mrf.mxu0
    %1207 = vmatprep.mubr.bf16.mxu0 0
    %1208 = vmatmul.mubr.bf16.gmra.mxu0 %v285
    %v1209 = vpop.f32.mrf.mxu0
    %v1210 = vadd.f32 %v1013, %v1209
    %v1211 = vpop.f32.mrf.mxu0
    %v1212 = vpop.f32.mrf.mxu0
    %v1213 = vadd.f32 %v1013, %v1212
    %v1214 = vpop.f32.mrf.mxu0
    %1215 = vmatprep.mubr.bf16.mxu0 0
    %1216 = vmatmul.mubr.bf16.gmra.mxu0 %v286
    %v1217 = vpop.f32.mrf.mxu0
    %v1218 = vadd.f32 %v1013, %v1217
    %v1219 = vpop.f32.mrf.mxu0
    %v1220 = vpop.f32.mrf.mxu0
    %v1221 = vadd.f32 %v1013, %v1220
    %v1222 = vpop.f32.mrf.mxu0
    %1223 = vmatprep.mubr.bf16.mxu0 0
    %1224 = vmatmul.mubr.bf16.gmra.mxu0 %v287
    %v1225 = vpop.f32.mrf.mxu0
    %v1226 = vadd.f32 %v1013, %v1225
    %v1227 = vpop.f32.mrf.mxu0
    %v1228 = vpop.f32.mrf.mxu0
    %v1229 = vadd.f32 %v1013, %v1228
    %v1230 = vpop.f32.mrf.mxu0
    %1231 = vmatprep.mubr.bf16.mxu0 0
    %1232 = vmatmul.mubr.bf16.gmra.mxu0 %v288
    %v1233 = vpop.f32.mrf.mxu0
    %v1234 = vadd.f32 %v1013, %v1233
    %v1235 = vpop.f32.mrf.mxu0
    %v1236 = vpop.f32.mrf.mxu0
    %v1237 = vadd.f32 %v1013, %v1236
    %v1238 = vpop.f32.mrf.mxu0
    %1239 = vmatprep.mubr.bf16.mxu0 0
    %1240 = vmatmul.mubr.bf16.gmra.mxu0 %v289
    %v1241 = vpop.f32.mrf.mxu0
    %v1242 = vadd.f32 %v1013, %v1241
    %v1243 = vpop.f32.mrf.mxu0
    %v1244 = vpop.f32.mrf.mxu0
    %v1245 = vadd.f32 %v1013, %v1244
    %v1246 = vpop.f32.mrf.mxu0
    %1247 = vmatprep.mubr.bf16.mxu0 0
    %1248 = vmatmul.mubr.bf16.gmra.mxu0 %v290
    %v1249 = vpop.f32.mrf.mxu0
    %v1250 = vadd.f32 %v1013, %v1249
    %v1251 = vpop.f32.mrf.mxu0
    %v1252 = vpop.f32.mrf.mxu0
    %v1253 = vadd.f32 %v1013, %v1252
    %v1254 = vpop.f32.mrf.mxu0
    %1255 = vmatprep.mubr.bf16.mxu0 0
    %1256 = vmatmul.mubr.bf16.gmra.mxu0 %v291
    %v1257 = vpop.f32.mrf.mxu0
    %v1258 = vadd.f32 %v1013, %v1257
    %v1259 = vpop.f32.mrf.mxu0
    %v1260 = vpop.f32.mrf.mxu0
    %v1261 = vadd.f32 %v1013, %v1260
    %v1262 = vpop.f32.mrf.mxu0
    %1263 = vmatprep.mubr.bf16.mxu0 0
    %1264 = vmatmul.mubr.bf16.gmra.mxu0 %v292
    %v1265 = vpop.f32.mrf.mxu0
    %v1266 = vadd.f32 %v1013, %v1265
    %v1267 = vpop.f32.mrf.mxu0
    %v1268 = vpop.f32.mrf.mxu0
    %v1269 = vadd.f32 %v1013, %v1268
    %v1270 = vpop.f32.mrf.mxu0
    %1271 = vmatprep.mubr.bf16.mxu0 0
    %1272 = vmatmul.mubr.bf16.gmra.mxu0 %v293
    %v1273 = vpop.f32.mrf.mxu0
    %v1274 = vadd.f32 %v1013, %v1273
    %v1275 = vpop.f32.mrf.mxu0
    %v1276 = vpop.f32.mrf.mxu0
    %v1277 = vadd.f32 %v1013, %v1276
    %v1278 = vpop.f32.mrf.mxu0
    %1279 = vmatprep.mubr.bf16.mxu0 0
    %1280 = vmatmul.mubr.bf16.gmra.mxu0 %v294
    %v1281 = vpop.f32.mrf.mxu0
    %v1282 = vadd.f32 %v1013, %v1281
    %v1283 = vpop.f32.mrf.mxu0
    %v1284 = vpop.f32.mrf.mxu0
    %v1285 = vadd.f32 %v1013, %v1284
    %v1286 = vpop.f32.mrf.mxu0
    %1287 = vmatprep.mubr.bf16.mxu0 0
    %1288 = vmatmul.mubr.bf16.gmra.mxu0 %v295
    %v1289 = vpop.f32.mrf.mxu0
    %v1290 = vadd.f32 %v1013, %v1289
    %v1291 = vpop.f32.mrf.mxu0
    %v1292 = vpop.f32.mrf.mxu0
    %v1293 = vadd.f32 %v1013, %v1292
    %v1294 = vpop.f32.mrf.mxu0
    %1295 = vmatprep.mubr.bf16.mxu0 0
    %1296 = vmatmul.mubr.bf16.gmra.mxu0 %v296
    %v1297 = vpop.f32.mrf.mxu0
    %v1298 = vadd.f32 %v1013, %v1297
    %v1299 = vpop.f32.mrf.mxu0
    %v1300 = vpop.f32.mrf.mxu0
    %v1301 = vadd.f32 %v1013, %v1300
    %v1302 = vpop.f32.mrf.mxu0
    %1303 = vmatprep.mubr.bf16.mxu0 0
    %1304 = vmatmul.mubr.bf16.gmra.mxu0 %v297
    %v1305 = vpop.f32.mrf.mxu0
    %v1306 = vadd.f32 %v1013, %v1305
    %v1307 = vpop.f32.mrf.mxu0
    %v1308 = vpop.f32.mrf.mxu0
    %v1309 = vadd.f32 %v1013, %v1308
    %v1310 = vpop.f32.mrf.mxu0
    %1311 = vmatprep.mubr.bf16.mxu0 0
    %1312 = vmatmul.mubr.bf16.gmra.mxu0 %v298
    %v1313 = vpop.f32.mrf.mxu0
    %v1314 = vadd.f32 %v1013, %v1313
    %v1315 = vpop.f32.mrf.mxu0
    %v1316 = vpop.f32.mrf.mxu0
    %v1317 = vadd.f32 %v1013, %v1316
    %v1318 = vpop.f32.mrf.mxu0
    %1319 = vmatprep.mubr.bf16.mxu0 0
    %1320 = vmatmul.mubr.bf16.gmra.mxu0 %v299
    %v1321 = vpop.f32.mrf.mxu0
    %v1322 = vadd.f32 %v1013, %v1321
    %v1323 = vpop.f32.mrf.mxu0
    %v1324 = vpop.f32.mrf.mxu0
    %v1325 = vadd.f32 %v1013, %v1324
    %v1326 = vpop.f32.mrf.mxu0
    %1327 = vmatprep.mubr.bf16.mxu0 0
    %1328 = vmatmul.mubr.bf16.gmra.mxu0 %v300
    %v1329 = vpop.f32.mrf.mxu0
    %v1330 = vadd.f32 %v1013, %v1329
    %v1331 = vpop.f32.mrf.mxu0
    %v1332 = vpop.f32.mrf.mxu0
    %v1333 = vadd.f32 %v1013, %v1332
    %v1334 = vpop.f32.mrf.mxu0
    %1335 = vmatprep.mubr.bf16.mxu0 0
    %1336 = vmatmul.mubr.bf16.gmra.mxu0 %v301
    %v1337 = vpop.f32.mrf.mxu0
    %v1338 = vadd.f32 %v1013, %v1337
    %v1339 = vpop.f32.mrf.mxu0
    %v1340 = vpop.f32.mrf.mxu0
    %v1341 = vadd.f32 %v1013, %v1340
    %v1342 = vpop.f32.mrf.mxu0
    %1343 = vmatprep.mubr.bf16.mxu0 0
    %1344 = vmatmul.mubr.bf16.gmra.mxu0 %v302
    %v1345 = vpop.f32.mrf.mxu0
    %v1346 = vadd.f32 %v1013, %v1345
    %v1347 = vpop.f32.mrf.mxu0
    %v1348 = vpop.f32.mrf.mxu0
    %v1349 = vadd.f32 %v1013, %v1348
    %v1350 = vpop.f32.mrf.mxu0
    %1351 = vdwg.mxu0
    %1352 = vst [vmem:[#allocation9] sm:$0xff] %v1098
    %1353 = vst [vmem:[#allocation9 + $0x8] sm:$0xff] %v1101
    %1354 = vst [vmem:[#allocation9 + $0x10] sm:$0xff] %v1106
    %1355 = vst [vmem:[#allocation9 + $0x18] sm:$0xff] %v1109
    %1356 = vst [vmem:[#allocation9 + $0x20] sm:$0xff] %v1114
    %1357 = vst [vmem:[#allocation9 + $0x28] sm:$0xff] %v1117
    %1358 = vst [vmem:[#allocation9 + $0x30] sm:$0xff] %v1122
    %1359 = vst [vmem:[#allocation9 + $0x38] sm:$0xff] %v1125
    %1360 = vst [vmem:[#allocation9 + $0x40] sm:$0xff] %v1130
    %1361 = vst [vmem:[#allocation9 + $0x48] sm:$0xff] %v1133
    %1362 = vst [vmem:[#allocation9 + $0x50] sm:$0xff] %v1138
    %1363 = vst [vmem:[#allocation9 + $0x58] sm:$0xff] %v1141
    %1364 = vst [vmem:[#allocation9 + $0x60] sm:$0xff] %v1146
    %1365 = vst [vmem:[#allocation9 + $0x68] sm:$0xff] %v1149
    %1366 = vst [vmem:[#allocation9 + $0x70] sm:$0xff] %v1154
    %1367 = vst [vmem:[#allocation9 + $0x78] sm:$0xff] %v1157
    %1368 = vst [vmem:[#allocation9 + $0x80] sm:$0xff] %v1162
    %1369 = vst [vmem:[#allocation9 + $0x88] sm:$0xff] %v1165
    %1370 = vst [vmem:[#allocation9 + $0x90] sm:$0xff] %v1170
    %1371 = vst [vmem:[#allocation9 + $0x98] sm:$0xff] %v1173
    %1372 = vst [vmem:[#allocation9 + $0xa0] sm:$0xff] %v1178
    %1373 = vst [vmem:[#allocation9 + $0xa8] sm:$0xff] %v1181
    %1374 = vst [vmem:[#allocation9 + $0xb0] sm:$0xff] %v1186
    %1375 = vst [vmem:[#allocation9 + $0xb8] sm:$0xff] %v1189
    %1376 = vst [vmem:[#allocation9 + $0xc0] sm:$0xff] %v1194
    %1377 = vst [vmem:[#allocation9 + $0xc8] sm:$0xff] %v1197
    %1378 = vst [vmem:[#allocation9 + $0xd0] sm:$0xff] %v1202
    %1379 = vst [vmem:[#allocation9 + $0xd8] sm:$0xff] %v1205
    %1380 = vst [vmem:[#allocation9 + $0xe0] sm:$0xff] %v1210
    %1381 = vst [vmem:[#allocation9 + $0xe8] sm:$0xff] %v1213
    %1382 = vst [vmem:[#allocation9 + $0xf0] sm:$0xff] %v1218
    %1383 = vst [vmem:[#allocation9 + $0xf8] sm:$0xff] %v1221
    %1384 = vst [vmem:[#allocation9 + $0x100] sm:$0xff] %v1226
    %1385 = vst [vmem:[#allocation9 + $0x108] sm:$0xff] %v1229
    %1386 = vst [vmem:[#allocation9 + $0x110] sm:$0xff] %v1234
    %1387 = vst [vmem:[#allocation9 + $0x118] sm:$0xff] %v1237
    %1388 = vst [vmem:[#allocation9 + $0x120] sm:$0xff] %v1242
    %1389 = vst [vmem:[#allocation9 + $0x128] sm:$0xff] %v1245
    %1390 = vst [vmem:[#allocation9 + $0x130] sm:$0xff] %v1250
    %1391 = vst [vmem:[#allocation9 + $0x138] sm:$0xff] %v1253
    %1392 = vst [vmem:[#allocation9 + $0x140] sm:$0xff] %v1258
    %1393 = vst [vmem:[#allocation9 + $0x148] sm:$0xff] %v1261
    %1394 = vst [vmem:[#allocation9 + $0x150] sm:$0xff] %v1266
    %1395 = vst [vmem:[#allocation9 + $0x158] sm:$0xff] %v1269
    %1396 = vst [vmem:[#allocation9 + $0x160] sm:$0xff] %v1274
    %1397 = vst [vmem:[#allocation9 + $0x168] sm:$0xff] %v1277
    %1398 = vst [vmem:[#allocation9 + $0x170] sm:$0xff] %v1282
    %1399 = vst [vmem:[#allocation9 + $0x178] sm:$0xff] %v1285
    %1400 = vst [vmem:[#allocation9 + $0x180] sm:$0xff] %v1290
    %1401 = vst [vmem:[#allocation9 + $0x188] sm:$0xff] %v1293
    %1402 = vst [vmem:[#allocation9 + $0x190] sm:$0xff] %v1298
    %1403 = vst [vmem:[#allocation9 + $0x198] sm:$0xff] %v1301
    %1404 = vst [vmem:[#allocation9 + $0x1a0] sm:$0xff] %v1306
    %1405 = vst [vmem:[#allocation9 + $0x1a8] sm:$0xff] %v1309
    %1406 = vst [vmem:[#allocation9 + $0x1b0] sm:$0xff] %v1314
    %1407 = vst [vmem:[#allocation9 + $0x1b8] sm:$0xff] %v1317
    %1408 = vst [vmem:[#allocation9 + $0x1c0] sm:$0xff] %v1322
    %1409 = vst [vmem:[#allocation9 + $0x1c8] sm:$0xff] %v1325
    %1410 = vst [vmem:[#allocation9 + $0x1d0] sm:$0xff] %v1330
    %1411 = vst [vmem:[#allocation9 + $0x1d8] sm:$0xff] %v1333
    %1412 = vst [vmem:[#allocation9 + $0x1e0] sm:$0xff] %v1338
    %1413 = vst [vmem:[#allocation9 + $0x1e8] sm:$0xff] %v1341
    %1414 = vst [vmem:[#allocation9 + $0x1f0] sm:$0xff] %v1346
    %1415 = vst [vmem:[#allocation9 + $0x1f8] sm:$0xff] %v1349
    // Predicated region
    $region30: #{tpu_custom_call.1} parent=1 // pred_check
      _
    $region31: #{tpu_custom_call.1} parent=1 // pred_check_branch
      %1417 = sbr.rel (0) target = $region33
    $region32: #{tpu_custom_call.1} parent=1 // pred_region
      %s1419 = ssub.s32 4096, 4096
      %1420 = vsyncadd [#allocation4], %s1419
      %s1421 = sshll.u32 [#allocation8], 4
      %s1422 = int_to_ptr.vmem [resolvable:$true] %s1421
      %1427 = dma.vmem_to_hbm [thread:$0]  %s1422, 4096, %s4, [#allocation4], 64, 64, 4
    $region33: #{tpu_custom_call.1} parent=1 // pred_fallthru
      _
    // Predicated region
    $region34: #{tpu_custom_call.1} parent=1 // pred_check
      _
    $region35: #{tpu_custom_call.1} parent=1 // pred_check_branch
      %1429 = sbr.rel (0) target = $region37
    $region36: #{tpu_custom_call.1} parent=1 // pred_region
      %s1431 = ssub.s32 8192, 8192
      %1432 = vsyncadd [#allocation10], %s1431
      %s1433 = sshll.u32 [#allocation9], 4
      %s1434 = int_to_ptr.vmem [resolvable:$true] %s1433
      %1439 = dma.vmem_to_hbm [thread:$0]  %s1434, 8192, %s5, [#allocation10], 128, 128, 8
    $region37: #{tpu_custom_call.1} parent=1 // pred_fallthru
      _
    // Predicated region
    $region38: #{tpu_custom_call.1} parent=1 // pred_check
      _
    $region39: #{tpu_custom_call.1} parent=1 // pred_check_branch
      %1441 = sbr.rel (0) target = $region41
    $region40: #{tpu_custom_call.1} parent=1 // pred_region
      %1442 = dma.done [#allocation4], 4096
    $region41: #{tpu_custom_call.1} parent=1 // pred_fallthru
      _
    // Predicated region
    $region42: #{tpu_custom_call.1} parent=1 // pred_check
      _
    $region43: #{tpu_custom_call.1} parent=1 // pred_check_branch
      %1444 = sbr.rel (0) target = $region45
    $region44: #{tpu_custom_call.1} parent=1 // pred_region
      %1445 = dma.done [#allocation10], 8192
    $region45: #{tpu_custom_call.1} parent=1 // pred_fallthru
      _
    %1446 = vsyncpa [#allocation3], 1
    %1447 = vsyncpa [#allocation6], 1
    %1448 = vsyncpa [#allocation4], 1
    %1449 = vsyncpa [#allocation10], 1

</llo_original>
